<compile_context>
chip_gen: v7x
topology: tpu7x:2x2x1
jax: 0.10.0
libtpu: 0.0.40
codegen_flags: <defaults>
</compile_context>

<pallas_src>
import jax
import jax.numpy as jnp
from jax import lax
from jax.experimental import pallas as pl
from jax.experimental.pallas import tpu as pltpu


def attention_kernel(x_ref, wq_ref, wk_ref, wv_ref, wout_ref, bout_ref,
                     o_ref, acc_ref):
    # Grid = (batch, heads). One (batch, head) pair per step.
    h = pl.program_id(1)

    @pl.when(h == 0)
    def _():
        acc_ref[...] = jnp.zeros_like(acc_ref)

    x = x_ref[...].astype(jnp.bfloat16)       # (N, D)      bf16
    wq = wq_ref[...]                          # (D, dh)     bf16 (scale folded)
    wk = wk_ref[...]                          # (D, dh)     bf16
    wv = wv_ref[...]                          # (D, dh)     bf16
    wout = wout_ref[...]                      # (dh, Dp)    bf16 (zero-padded)

    # Per-head Q/K/V projections: bf16 MXU matmuls, f32 accumulation.
    q = jnp.dot(x, wq, preferred_element_type=jnp.float32)   # (N, dh) f32
    k = jnp.dot(x, wk, preferred_element_type=jnp.float32)   # (N, dh) f32
    v = jnp.dot(x, wv, preferred_element_type=jnp.float32)   # (N, dh) f32

    # scores = (q * scale) @ k^T  (scale already folded into wq), no transpose op.
    s = lax.dot_general(q.astype(jnp.bfloat16), k.astype(jnp.bfloat16),
                        (((1,), (1,)), ((), ())),
                        preferred_element_type=jnp.float32)   # (N, N) f32

    # Softmax in f32 (EUP exp / approx-reciprocal; dropout p=0.0 == identity).
    s = s - jnp.max(s, axis=-1, keepdims=True)
    e = jnp.exp(s)
    denom = jnp.sum(e, axis=-1, keepdims=True)
    attn = e * pl.reciprocal(denom, approx=True)

    o_h = jnp.dot(attn.astype(jnp.bfloat16), v.astype(jnp.bfloat16),
                  preferred_element_type=jnp.float32)         # (N, dh) f32

    # Fused per-head output projection -> lane-dense f32 accumulator.
    acc_ref[...] += jnp.dot(o_h.astype(jnp.bfloat16), wout,
                            preferred_element_type=jnp.float32)  # (N, Dp)

    @pl.when(h == pl.num_programs(1) - 1)
    def _():
        o_ref[...] = (acc_ref[...] + bout_ref[...]).astype(o_ref.dtype)


def attention_forward(x, w_qkv, w_out, b_out, *, heads, dim_head):
    """x: (B, N, D) f32.  PyTorch parameter layouts:
       w_qkv: (3*inner, D) = to_qkv.weight,  w_out: (D, inner) = to_out[0].weight,
       b_out: (D,) = to_out[0].bias."""
    B, N, D = x.shape
    inner = heads * dim_head
    scale = dim_head ** (-0.5)

    # Lane-dense output width (unmasked stores); real ViT dims are already %128.
    Dp = D if D % 128 == 0 else ((D + 127) // 128) * 128

    # ---- wrapper-side parameter plumbing (once per call, plain XLA glue) ----
    wq_full = w_qkv[0 * inner:1 * inner]          # (inner, D)
    wk_full = w_qkv[1 * inner:2 * inner]
    wv_full = w_qkv[2 * inner:3 * inner]

    def to_heads(w):                               # (inner, D) -> (H, D, dh)
        return w.reshape(heads, dim_head, D).transpose(0, 2, 1)

    wq_heads = (to_heads(wq_full) * scale).astype(jnp.bfloat16)  # scale folded
    wk_heads = to_heads(wk_full).astype(jnp.bfloat16)
    wv_heads = to_heads(wv_full).astype(jnp.bfloat16)

    wout_heads = w_out.T.reshape(heads, dim_head, D)             # (H, dh, D)
    wout_heads = jnp.pad(wout_heads, ((0, 0), (0, 0), (0, Dp - D)))
    wout_heads = wout_heads.astype(jnp.bfloat16)                 # (H, dh, Dp)

    bias_pad = jnp.pad(b_out, (0, Dp - D)).reshape(1, Dp).astype(jnp.float32)

    y_pad = pl.pallas_call(
        attention_kernel,
        out_shape=jax.ShapeDtypeStruct((B, N, Dp), x.dtype),
        grid=(B, heads),
        in_specs=[
            pl.BlockSpec((None, N, D), lambda b, h: (b, 0, 0)),          # x
            pl.BlockSpec((None, D, dim_head), lambda b, h: (h, 0, 0)),   # wq
            pl.BlockSpec((None, D, dim_head), lambda b, h: (h, 0, 0)),   # wk
            pl.BlockSpec((None, D, dim_head), lambda b, h: (h, 0, 0)),   # wv
            pl.BlockSpec((None, dim_head, Dp), lambda b, h: (h, 0, 0)),  # wout
            pl.BlockSpec((1, Dp), lambda b, h: (0, 0)),                  # bias
        ],
        out_specs=pl.BlockSpec((None, N, Dp), lambda b, h: (b, 0, 0)),
        scratch_shapes=[pltpu.VMEM((N, Dp), jnp.float32)],
        compiler_params=pltpu.CompilerParams(
            dimension_semantics=("parallel", "arbitrary"),
            # Explicit scoped-VMEM budget (defaults: 16 MiB v5e, 32 MiB v6e/v7x).
            # TODO(synk): at real ViT shapes re-derive tiles + this limit per
            # generation (64 MiB physical VMEM on v7x) and tile N into q-tiles.
            vmem_limit_bytes=32 * 1024 * 1024,
        ),
    )(x, wq_heads, wk_heads, wv_heads, wout_heads, bias_pad)

    return y_pad[:, :, :D]


def attention_reference(x, w_qkv, w_out, b_out, *, heads, dim_head):
    """Pure-JAX f32 reference mirroring the PyTorch module."""
    B, N, D = x.shape
    inner = heads * dim_head
    scale = dim_head ** (-0.5)
    qkv = x @ w_qkv.T                                      # (B, N, 3*inner)
    q, k, v = jnp.split(qkv, 3, axis=-1)

    def to_heads(t):
        return t.reshape(B, N, heads, dim_head).transpose(0, 2, 1, 3)

    q, k, v = map(to_heads, (q, k, v))
    dots = jnp.einsum('bhnd,bhmd->bhnm', q, k) * scale
    attn = jax.nn.softmax(dots, axis=-1)
    out = jnp.einsum('bhnm,bhmd->bhnd', attn, v)
    out = out.transpose(0, 2, 1, 3).reshape(B, N, inner)
    return out @ w_out.T + b_out


if __name__ == "__main__":
    # Small shapes consistent with the module: dim=32, heads=4, dim_head=16.
    B, N, D = 2, 8, 32
    heads, dim_head = 4, 16
    inner = heads * dim_head

    key = jax.random.PRNGKey(0)
    kx, kqkv, kout, kb = jax.random.split(key, 4)

    x = jax.random.normal(kx, (B, N, D), dtype=jnp.float32)
    # PyTorch parameter shapes: to_qkv.weight (3*inner, D),
    # to_out[0].weight (D, inner), to_out[0].bias (D,).
    w_qkv = 0.05 * jax.random.normal(kqkv, (3 * inner, D), dtype=jnp.float32)
    w_out = 0.05 * jax.random.normal(kout, (D, inner), dtype=jnp.float32)
    b_out = 0.05 * jax.random.normal(kb, (D,), dtype=jnp.float32)

    y = attention_forward(x, w_qkv, w_out, b_out, heads=heads, dim_head=dim_head)
    y = jax.block_until_ready(y)

    y_ref = attention_reference(x, w_qkv, w_out, b_out,
                                heads=heads, dim_head=dim_head)
    assert y.shape == (B, N, D)
    # Tolerance relaxed for bf16 MXU operands + approximate EUP reciprocal.
    assert jnp.allclose(y, y_ref, atol=3e-2, rtol=3e-2), "mismatch vs JAX reference"

    print("KERNEL_OK")
</pallas_src>

<mosaic_0001>
module attributes {stable_mosaic.version = 11 : i64} {
  func.func @attention_kernel(%arg0: i32, %arg1: i32, %arg2: memref<1x8x32xf32, #tpu.memory_space<vmem>>, %arg3: memref<1x32x16xbf16, #tpu.memory_space<vmem>>, %arg4: memref<1x32x16xbf16, #tpu.memory_space<vmem>>, %arg5: memref<1x32x16xbf16, #tpu.memory_space<vmem>>, %arg6: memref<1x16x128xbf16, #tpu.memory_space<vmem>>, %arg7: memref<1x128xf32, #tpu.memory_space<vmem>>, %arg8: memref<1x8x128xf32, #tpu.memory_space<vmem>>, %arg9: memref<8x128xf32, #tpu.memory_space<vmem>>) attributes {dimension_semantics = [#tpu.dimension_semantics<parallel>, #tpu.dimension_semantics<arbitrary>], iteration_bounds = array<i64: 2, 4>, scalar_prefetch = 0 : i64, scratch_operands = 1 : i64, tpu.core_type = #tpu.core_type<tc>, window_params = [{transform_indices = @transform_0, window_bounds = array<i64: 1, 8, 32>}, {transform_indices = @transform_1, window_bounds = array<i64: 1, 32, 16>}, {transform_indices = @transform_2, window_bounds = array<i64: 1, 32, 16>}, {transform_indices = @transform_3, window_bounds = array<i64: 1, 32, 16>}, {transform_indices = @transform_4, window_bounds = array<i64: 1, 16, 128>}, {pipeline_mode = #tpu.pipeline_mode<synchronous>, transform_indices = @transform_5, window_bounds = array<i64: 1, 128>}, {transform_indices = @transform_6, window_bounds = array<i64: 1, 8, 128>}]} {
    %c0_i32 = arith.constant 0 : i32
    %0 = arith.cmpi eq, %arg1, %c0_i32 : i32
    %1 = arith.extui %0 : i1 to i32
    %c0_i32_0 = arith.constant 0 : i32
    %2 = arith.cmpi ne, %1, %c0_i32_0 : i32
    scf.if %2 {
      %cst_27 = arith.constant 0.000000e+00 : f32
      %41 = vector.broadcast %cst_27 : f32 to vector<8x128xf32>
      %c0_28 = arith.constant 0 : index
      %c0_29 = arith.constant 0 : index
      %42 = vector.load %arg9[%c0_28, %c0_29] : memref<8x128xf32, #tpu.memory_space<vmem>>, vector<8x128xf32>
      tpu.vector_store %arg9[%c0_28, %c0_29], %41 {strides = array<i32>} : memref<8x128xf32, #tpu.memory_space<vmem>>, vector<8x128xf32>,
    } else {
    }
    %c0 = arith.constant 0 : index
    %c0_1 = arith.constant 0 : index
    %c0_2 = arith.constant 0 : index
    %3 = vector.load %arg2[%c0, %c0_1, %c0_2] : memref<1x8x32xf32, #tpu.memory_space<vmem>>, vector<1x8x32xf32>
    %4 = vector.shape_cast %3 : vector<1x8x32xf32> to vector<8x32xf32>
    %5 = arith.truncf %4 : vector<8x32xf32> to vector<8x32xbf16>
    %c0_3 = arith.constant 0 : index
    %c0_4 = arith.constant 0 : index
    %c0_5 = arith.constant 0 : index
    %6 = vector.load %arg3[%c0_3, %c0_4, %c0_5] : memref<1x32x16xbf16, #tpu.memory_space<vmem>>, vector<1x32x16xbf16>
    %7 = vector.shape_cast %6 : vector<1x32x16xbf16> to vector<32x16xbf16>
    %c0_6 = arith.constant 0 : index
    %c0_7 = arith.constant 0 : index
    %c0_8 = arith.constant 0 : index
    %8 = vector.load %arg4[%c0_6, %c0_7, %c0_8] : memref<1x32x16xbf16, #tpu.memory_space<vmem>>, vector<1x32x16xbf16>
    %9 = vector.shape_cast %8 : vector<1x32x16xbf16> to vector<32x16xbf16>
    %c0_9 = arith.constant 0 : index
    %c0_10 = arith.constant 0 : index
    %c0_11 = arith.constant 0 : index
    %10 = vector.load %arg5[%c0_9, %c0_10, %c0_11] : memref<1x32x16xbf16, #tpu.memory_space<vmem>>, vector<1x32x16xbf16>
    %11 = vector.shape_cast %10 : vector<1x32x16xbf16> to vector<32x16xbf16>
    %c0_12 = arith.constant 0 : index
    %c0_13 = arith.constant 0 : index
    %c0_14 = arith.constant 0 : index
    %12 = vector.load %arg6[%c0_12, %c0_13, %c0_14] : memref<1x16x128xbf16, #tpu.memory_space<vmem>>, vector<1x16x128xbf16>
    %13 = vector.shape_cast %12 : vector<1x16x128xbf16> to vector<16x128xbf16>
    %cst = arith.constant dense<0.000000e+00> : vector<8x16xf32>
    %14 = tpu.matmul %5, %7, %cst {dimension_numbers = #tpu.dot_dimension_numbers<[1], [0], [0], [1], [0, 0, 1, 1], [], []>} : vector<8x32xbf16>, vector<32x16xbf16>, vector<8x16xf32> -> vector<8x16xf32>
    %cst_15 = arith.constant dense<0.000000e+00> : vector<8x16xf32>
    %15 = tpu.matmul %5, %9, %cst_15 {dimension_numbers = #tpu.dot_dimension_numbers<[1], [0], [0], [1], [0, 0, 1, 1], [], []>} : vector<8x32xbf16>, vector<32x16xbf16>, vector<8x16xf32> -> vector<8x16xf32>
    %cst_16 = arith.constant dense<0.000000e+00> : vector<8x16xf32>
    %16 = tpu.matmul %5, %11, %cst_16 {dimension_numbers = #tpu.dot_dimension_numbers<[1], [0], [0], [1], [0, 0, 1, 1], [], []>} : vector<8x32xbf16>, vector<32x16xbf16>, vector<8x16xf32> -> vector<8x16xf32>
    %17 = arith.truncf %14 : vector<8x16xf32> to vector<8x16xbf16>
    %18 = arith.truncf %15 : vector<8x16xf32> to vector<8x16xbf16>
    %cst_17 = arith.constant dense<0.000000e+00> : vector<8x8xf32>
    %19 = tpu.matmul %17, %18, %cst_17 {dimension_numbers = #tpu.dot_dimension_numbers<[1], [1], [0], [0], [0, 0, 1, 0], [], []>} : vector<8x16xbf16>, vector<8x16xbf16>, vector<8x8xf32> -> vector<8x8xf32>
    %cst_18 = arith.constant dense<0xFF800000> : vector<8xf32>
    %20 = vector.multi_reduction <maximumf>, %19, %cst_18 [1] : vector<8x8xf32> to vector<8xf32>
    %21 = vector.shape_cast %20 : vector<8xf32> to vector<8x1xf32>
    %22 = vector.broadcast %21 : vector<8x1xf32> to vector<8x8xf32>
    %23 = arith.subf %19, %22 : vector<8x8xf32>
    %24 = math.exp %23 : vector<8x8xf32>
    %cst_19 = arith.constant dense<0.000000e+00> : vector<8xf32>
    %25 = vector.multi_reduction <add>, %24, %cst_19 [1] : vector<8x8xf32> to vector<8xf32>
    %26 = vector.shape_cast %25 : vector<8xf32> to vector<8x1xf32>
    %27 = tpu.reciprocal %26 {approx = true} : vector<8x1xf32> -> vector<8x1xf32>
    %28 = vector.broadcast %27 : vector<8x1xf32> to vector<8x8xf32>
    %29 = arith.mulf %24, %28 : vector<8x8xf32>
    %30 = arith.truncf %29 : vector<8x8xf32> to vector<8x8xbf16>
    %31 = arith.truncf %16 : vector<8x16xf32> to vector<8x16xbf16>
    %cst_20 = arith.constant dense<0.000000e+00> : vector<8x16xf32>
    %32 = tpu.matmul %30, %31, %cst_20 {dimension_numbers = #tpu.dot_dimension_numbers<[1], [0], [0], [1], [0, 0, 1, 1], [], []>} : vector<8x8xbf16>, vector<8x16xbf16>, vector<8x16xf32> -> vector<8x16xf32>
    %c0_21 = arith.constant 0 : index
    %c0_22 = arith.constant 0 : index
    %33 = vector.load %arg9[%c0_21, %c0_22] : memref<8x128xf32, #tpu.memory_space<vmem>>, vector<8x128xf32>
    %34 = arith.truncf %32 : vector<8x16xf32> to vector<8x16xbf16>
    %cst_23 = arith.constant dense<0.000000e+00> : vector<8x128xf32>
    %35 = tpu.matmul %34, %13, %cst_23 {dimension_numbers = #tpu.dot_dimension_numbers<[1], [0], [0], [1], [0, 0, 1, 1], [], []>} : vector<8x16xbf16>, vector<16x128xbf16>, vector<8x128xf32> -> vector<8x128xf32>
    %36 = arith.addf %33, %35 : vector<8x128xf32>
    %c0_24 = arith.constant 0 : index
    %c0_25 = arith.constant 0 : index
    %37 = vector.load %arg9[%c0_24, %c0_25] : memref<8x128xf32, #tpu.memory_space<vmem>>, vector<8x128xf32>
    tpu.vector_store %arg9[%c0_24, %c0_25], %36 {strides = array<i32>} : memref<8x128xf32, #tpu.memory_space<vmem>>, vector<8x128xf32>,
    %c3_i32 = arith.constant 3 : i32
    %38 = arith.cmpi eq, %arg1, %c3_i32 : i32
    %39 = arith.extui %38 : i1 to i32
    %c0_i32_26 = arith.constant 0 : i32
    %40 = arith.cmpi ne, %39, %c0_i32_26 : i32
    scf.if %40 {
      %c0_27 = arith.constant 0 : index
      %c0_28 = arith.constant 0 : index
      %41 = vector.load %arg9[%c0_27, %c0_28] : memref<8x128xf32, #tpu.memory_space<vmem>>, vector<8x128xf32>
      %c0_29 = arith.constant 0 : index
      %c0_30 = arith.constant 0 : index
      %42 = vector.load %arg7[%c0_29, %c0_30] : memref<1x128xf32, #tpu.memory_space<vmem>>, vector<1x128xf32>
      %43 = vector.broadcast %42 : vector<1x128xf32> to vector<8x128xf32>
      %44 = arith.addf %41, %43 : vector<8x128xf32>
      %c0_31 = arith.constant 0 : index
      %c0_32 = arith.constant 0 : index
      %c0_33 = arith.constant 0 : index
      %45 = vector.load %arg8[%c0_31, %c0_32, %c0_33] : memref<1x8x128xf32, #tpu.memory_space<vmem>>, vector<1x8x128xf32>
      %46 = vector.shape_cast %45 : vector<1x8x128xf32> to vector<8x128xf32>
      %47 = vector.shape_cast %44 : vector<8x128xf32> to vector<1x8x128xf32>
      tpu.vector_store %arg8[%c0_31, %c0_32, %c0_33], %47 {strides = array<i32>} : memref<1x8x128xf32, #tpu.memory_space<vmem>>, vector<1x8x128xf32>,
    } else {
    }
    return
  }
  func.func @transform_0(%arg0: i32, %arg1: i32) -> (i32, i32, i32) {
    %c0_i32 = arith.constant 0 : i32
    %c0_i32_0 = arith.constant 0 : i32
    %c0_i32_1 = arith.constant 0 : i32
    return %arg0, %c0_i32, %c0_i32_0 : i32, i32, i32
  }
  func.func @transform_1(%arg0: i32, %arg1: i32) -> (i32, i32, i32) {
    %c0_i32 = arith.constant 0 : i32
    %c0_i32_0 = arith.constant 0 : i32
    %c0_i32_1 = arith.constant 0 : i32
    return %arg1, %c0_i32, %c0_i32_0 : i32, i32, i32
  }
  func.func @transform_2(%arg0: i32, %arg1: i32) -> (i32, i32, i32) {
    %c0_i32 = arith.constant 0 : i32
    %c0_i32_0 = arith.constant 0 : i32
    %c0_i32_1 = arith.constant 0 : i32
    return %arg1, %c0_i32, %c0_i32_0 : i32, i32, i32
  }
  func.func @transform_3(%arg0: i32, %arg1: i32) -> (i32, i32, i32) {
    %c0_i32 = arith.constant 0 : i32
    %c0_i32_0 = arith.constant 0 : i32
    %c0_i32_1 = arith.constant 0 : i32
    return %arg1, %c0_i32, %c0_i32_0 : i32, i32, i32
  }
  func.func @transform_4(%arg0: i32, %arg1: i32) -> (i32, i32, i32) {
    %c0_i32 = arith.constant 0 : i32
    %c0_i32_0 = arith.constant 0 : i32
    %c0_i32_1 = arith.constant 0 : i32
    return %arg1, %c0_i32, %c0_i32_0 : i32, i32, i32
  }
  func.func @transform_5(%arg0: i32, %arg1: i32) -> (i32, i32) {
    %c0_i32 = arith.constant 0 : i32
    %c0_i32_0 = arith.constant 0 : i32
    %c0_i32_1 = arith.constant 0 : i32
    return %c0_i32, %c0_i32_0 : i32, i32
  }
  func.func @transform_6(%arg0: i32, %arg1: i32) -> (i32, i32, i32) {
    %c0_i32 = arith.constant 0 : i32
    %c0_i32_0 = arith.constant 0 : i32
    %c0_i32_1 = arith.constant 0 : i32
    return %arg0, %c0_i32, %c0_i32_0 : i32, i32, i32
  }
}

</mosaic_0001>

<llo_original>
// kernel: tpu_custom_call.1
$region0: #{tpu_custom_call.1}
  #allocation0 [shape = 'u32[]', space=smem, size = 0x4, offset = 0x4, fixed_abs, tag = 'smem constant byte address 0x4 - core index']
  #allocation1 [shape = 'u32[144,128]{1,0:T(1,128)}', space=vmem, size = 0x12000, scoped, tag = 'internal scratch']
  #allocation2 [shape = 'f32[8,128]{1,0:T(8,128)}', space=vmem, size = 0x1000, scoped, tag = 'scratch operand']
  %s0 = inlined_call_operand.vmem [shape: f32[2,8,32], index: 0, kind: input, shape index: {}]
  %s1 = inlined_call_operand.vmem [shape: bf16[4,32,16], index: 1, kind: input, shape index: {}]
  %s2 = inlined_call_operand.vmem [shape: bf16[4,32,16], index: 2, kind: input, shape index: {}]
  %s3 = inlined_call_operand.vmem [shape: bf16[4,32,16], index: 3, kind: input, shape index: {}]
  %s4 = inlined_call_operand.vmem [shape: bf16[4,16,128], index: 4, kind: input, shape index: {}]
  %s5 = inlined_call_operand.vmem [shape: f32[1,128], index: 5, kind: input, shape index: {}]
  %s6 = inlined_call_operand.hbm [shape: f32[2,8,128], index: 6, kind: output, shape index: {}]
  %s7 = sld [smem:[#allocation0]]
  $region65: #{tpu_custom_call.1} parent=0
    _
  %s9 = ssub.s32 1, %s7
  %s10 = scalar_select 0, %s9, %s7
  $region1: #{tpu_custom_call.1} parent=0
    #allocation3 [shape = 'u8[8192]{0}', space=vmem, size = 0x2000, scoped, tag = 'output window, operand 0']
    #allocation4 [shape = 's32[2]{0}', space=sflag, size = 0x8, scoped, tag = 'scoped memory for tpu_custom_call.1']
    %11 = vsyncpa [#allocation4], 0
    %s12 = scalar_lea.sflag [#allocation4], 1
    %13 = vsyncpa %s12, 0
    loop: start=0, step=1, limit=10
    $region2: #{tpu_custom_call.1} parent=1 // loop_pre_header
      _
    $region3: #{tpu_custom_call.1} parent=1 // loop_header
      %s15 = sphi 0, %s19
      %p16 = scmp.ge.s32.totalorder %s15, 10
      %s22 = sphi 0, %s34
      %s23 = sphi 0, %s30
      %s24 = sphi 0, %s22
      %s25 = sphi 0, %s23
      %s26 = sphi 0, %s24
      %s27 = sphi 0, %s25
      %s37 = sphi 0, %s39
      %s40 = sphi 0, %s37
      %s41 = sphi 0, %s40
      %s57 = sphi 0, %s41
      %s63 = sphi 0, %s65
      %s66 = sphi 0, %s63
      %s67 = sphi 0, %s66
      %s83 = sphi 0, %s67
      %s89 = sphi 0, %s91
      %s92 = sphi 0, %s89
      %s93 = sphi 0, %s92
      %s109 = sphi 0, %s93
      %s115 = sphi 0, %s117
      %s118 = sphi 0, %s115
      %s119 = sphi 0, %s118
      %s135 = sphi 0, %s119
      %s141 = sphi 0, %s143
      %s144 = sphi 0, %s141
      %s145 = sphi 0, %s144
      %s161 = sphi 0, %s145
      %s165 = sphi 0, %s165
      %s167 = sphi 0, %s165
      %s168 = sphi 0, %s167
      %s182 = sphi 0, %s168
      %s188 = sphi 0, %s190
      %s191 = sphi 0, %s188
      %s192 = sphi 0, %s191
      %s208 = sphi 0, %s192
    $region4: #{tpu_custom_call.1} parent=1 // loop_header_branch
      %18 = sbr.rel (%p16) target = $region8
    $region5: #{tpu_custom_call.1} parent=1 // loop_body
      %s20 = ssub.s32 %s15, 1
      %s21 = ssub.s32 %s15, 2
      %s28 = sadd.s32 1, %s23
      %p29 = scmp.ge.s32.totalorder %s28, 4
      %s30 = scalar_select %p29, 0, %s28
      %s31 = sadd.s32 1, %s22
      %s32 = scalar_select %p29, %s31, %s22
      %p33 = scmp.ge.s32.totalorder %s32, 2
      %s34 = scalar_select %p33, 0, %s32
      %s35 = ssub.s32 %s22, %s34
      %p36 = scmp.eq.s32.totalorder %s35, 0
      %s38 = sadd.s32 %s37, 1
      %s39 = scalar_select %p36, %s37, %s38
      %p42 = pneg %p36
      %p43 = scmp.eq.s32.totalorder %s15, 7
      %p44 = por %p42, %p43
      %p45 = scmp.ne.s32.totalorder %s37, %s40
      %p46 = scmp.eq.s32.totalorder %s15, 0
      %p47 = por %p45, %p46
      %p48 = scmp.ne.s32.totalorder %s37, %s40
      %p49 = scmp.eq.s32.totalorder %s20, 7
      %p50 = por %p48, %p49
      %p51 = scmp.ne.s32.totalorder %s40, %s41
      %p52 = scmp.eq.s32.totalorder %s20, 0
      %p53 = por %p51, %p52
      %p54 = scmp.ne.s32.totalorder %s40, %s41
      %p55 = scmp.eq.s32.totalorder %s21, 7
      %p56 = por %p54, %p55
      %p58 = scmp.ne.s32.totalorder %s41, %s57
      %p59 = scmp.eq.s32.totalorder %s21, 0
      %p60 = por %p58, %p59
      %s61 = ssub.s32 %s23, %s30
      %p62 = scmp.eq.s32.totalorder %s61, 0
      %s64 = sadd.s32 %s63, 1
      %s65 = scalar_select %p62, %s63, %s64
      %p68 = pneg %p62
      %p69 = scmp.eq.s32.totalorder %s15, 7
      %p70 = por %p68, %p69
      %p71 = scmp.ne.s32.totalorder %s63, %s66
      %p72 = scmp.eq.s32.totalorder %s15, 0
      %p73 = por %p71, %p72
      %p74 = scmp.ne.s32.totalorder %s63, %s66
      %p75 = scmp.eq.s32.totalorder %s20, 7
      %p76 = por %p74, %p75
      %p77 = scmp.ne.s32.totalorder %s66, %s67
      %p78 = scmp.eq.s32.totalorder %s20, 0
      %p79 = por %p77, %p78
      %p80 = scmp.ne.s32.totalorder %s66, %s67
      %p81 = scmp.eq.s32.totalorder %s21, 7
      %p82 = por %p80, %p81
      %p84 = scmp.ne.s32.totalorder %s67, %s83
      %p85 = scmp.eq.s32.totalorder %s21, 0
      %p86 = por %p84, %p85
      %s87 = ssub.s32 %s23, %s30
      %p88 = scmp.eq.s32.totalorder %s87, 0
      %s90 = sadd.s32 %s89, 1
      %s91 = scalar_select %p88, %s89, %s90
      %p94 = pneg %p88
      %p95 = scmp.eq.s32.totalorder %s15, 7
      %p96 = por %p94, %p95
      %p97 = scmp.ne.s32.totalorder %s89, %s92
      %p98 = scmp.eq.s32.totalorder %s15, 0
      %p99 = por %p97, %p98
      %p100 = scmp.ne.s32.totalorder %s89, %s92
      %p101 = scmp.eq.s32.totalorder %s20, 7
      %p102 = por %p100, %p101
      %p103 = scmp.ne.s32.totalorder %s92, %s93
      %p104 = scmp.eq.s32.totalorder %s20, 0
      %p105 = por %p103, %p104
      %p106 = scmp.ne.s32.totalorder %s92, %s93
      %p107 = scmp.eq.s32.totalorder %s21, 7
      %p108 = por %p106, %p107
      %p110 = scmp.ne.s32.totalorder %s93, %s109
      %p111 = scmp.eq.s32.totalorder %s21, 0
      %p112 = por %p110, %p111
      %s113 = ssub.s32 %s23, %s30
      %p114 = scmp.eq.s32.totalorder %s113, 0
      %s116 = sadd.s32 %s115, 1
      %s117 = scalar_select %p114, %s115, %s116
      %p120 = pneg %p114
      %p121 = scmp.eq.s32.totalorder %s15, 7
      %p122 = por %p120, %p121
      %p123 = scmp.ne.s32.totalorder %s115, %s118
      %p124 = scmp.eq.s32.totalorder %s15, 0
      %p125 = por %p123, %p124
      %p126 = scmp.ne.s32.totalorder %s115, %s118
      %p127 = scmp.eq.s32.totalorder %s20, 7
      %p128 = por %p126, %p127
      %p129 = scmp.ne.s32.totalorder %s118, %s119
      %p130 = scmp.eq.s32.totalorder %s20, 0
      %p131 = por %p129, %p130
      %p132 = scmp.ne.s32.totalorder %s118, %s119
      %p133 = scmp.eq.s32.totalorder %s21, 7
      %p134 = por %p132, %p133
      %p136 = scmp.ne.s32.totalorder %s119, %s135
      %p137 = scmp.eq.s32.totalorder %s21, 0
      %p138 = por %p136, %p137
      %s139 = ssub.s32 %s23, %s30
      %p140 = scmp.eq.s32.totalorder %s139, 0
      %s142 = sadd.s32 %s141, 1
      %s143 = scalar_select %p140, %s141, %s142
      %p146 = pneg %p140
      %p147 = scmp.eq.s32.totalorder %s15, 7
      %p148 = por %p146, %p147
      %p149 = scmp.ne.s32.totalorder %s141, %s144
      %p150 = scmp.eq.s32.totalorder %s15, 0
      %p151 = por %p149, %p150
      %p152 = scmp.ne.s32.totalorder %s141, %s144
      %p153 = scmp.eq.s32.totalorder %s20, 7
      %p154 = por %p152, %p153
      %p155 = scmp.ne.s32.totalorder %s144, %s145
      %p156 = scmp.eq.s32.totalorder %s20, 0
      %p157 = por %p155, %p156
      %p158 = scmp.ne.s32.totalorder %s144, %s145
      %p159 = scmp.eq.s32.totalorder %s21, 7
      %p160 = por %p158, %p159
      %p162 = scmp.ne.s32.totalorder %s145, %s161
      %p163 = scmp.eq.s32.totalorder %s21, 0
      %p164 = por %p162, %p163
      %s166 = sadd.s32 %s165, 1
      %p169 = scmp.eq.s32.totalorder %s15, 7
      %p170 = scmp.ne.s32.totalorder %s165, %s167
      %p171 = scmp.eq.s32.totalorder %s15, 0
      %p172 = por %p170, %p171
      %p173 = scmp.ne.s32.totalorder %s165, %s167
      %p174 = scmp.eq.s32.totalorder %s20, 7
      %p175 = por %p173, %p174
      %p176 = scmp.ne.s32.totalorder %s167, %s168
      %p177 = scmp.eq.s32.totalorder %s20, 0
      %p178 = por %p176, %p177
      %p179 = scmp.ne.s32.totalorder %s167, %s168
      %p180 = scmp.eq.s32.totalorder %s21, 7
      %p181 = por %p179, %p180
      %p183 = scmp.ne.s32.totalorder %s168, %s182
      %p184 = scmp.eq.s32.totalorder %s21, 0
      %p185 = por %p183, %p184
      %s186 = ssub.s32 %s22, %s34
      %p187 = scmp.eq.s32.totalorder %s186, 0
      %s189 = sadd.s32 %s188, 1
      %s190 = scalar_select %p187, %s188, %s189
      %p193 = pneg %p187
      %p194 = scmp.eq.s32.totalorder %s15, 7
      %p195 = por %p193, %p194
      %p196 = scmp.ne.s32.totalorder %s188, %s191
      %p197 = scmp.eq.s32.totalorder %s15, 0
      %p198 = por %p196, %p197
      %p199 = scmp.ne.s32.totalorder %s188, %s191
      %p200 = scmp.eq.s32.totalorder %s20, 7
      %p201 = por %p199, %p200
      %p202 = scmp.ne.s32.totalorder %s191, %s192
      %p203 = scmp.eq.s32.totalorder %s20, 0
      %p204 = por %p202, %p203
      %p205 = scmp.ne.s32.totalorder %s191, %s192
      %p206 = scmp.eq.s32.totalorder %s21, 7
      %p207 = por %p205, %p206
      %p209 = scmp.ne.s32.totalorder %s192, %s208
      %p210 = scmp.eq.s32.totalorder %s21, 0
      %p211 = por %p209, %p210
      %p212 = scmp.le.s32.totalorder 1, %s15
      %p213 = scmp.lt.s32.totalorder %s15, 9
      %p214 = pnand %p212, %p213
      %p215 = pneg %p214
      // Predicated region
      $region9: #{tpu_custom_call.1} parent=5 // pred_check
        _
      $region10: #{tpu_custom_call.1} parent=5 // pred_check_branch
        %217 = sbr.rel (%p214) target = $region12
      $region11: #{tpu_custom_call.1} parent=5 // pred_region
        %s218 = ssub.s32 %s15, 1
        // Predicated region
        $region13: #{tpu_custom_call.1} parent=11 // pred_check
          %p219 = pneg %p178
        $region14: #{tpu_custom_call.1} parent=11 // pred_check_branch
          %221 = sbr.rel (%p219) target = $region16
        $region15: #{tpu_custom_call.1} parent=11 // pred_region
          _
        $region16: #{tpu_custom_call.1} parent=11 // pred_fallthru
          _
      $region12: #{tpu_custom_call.1} parent=5 // pred_fallthru
        _
      %p222 = scmp.lt.s32.totalorder %s15, 8
      // Predicated region
      $region17: #{tpu_custom_call.1} parent=5 // pred_check
        %p223 = pneg %p222
      $region18: #{tpu_custom_call.1} parent=5 // pred_check_branch
        %225 = sbr.rel (%p223) target = $region20
      $region19: #{tpu_custom_call.1} parent=5 // pred_region
        // Predicated region
        $region21: #{tpu_custom_call.1} parent=19 // pred_check
          %p226 = pneg %p47
        $region22: #{tpu_custom_call.1} parent=19 // pred_check_branch
          %228 = sbr.rel (%p226) target = $region24
        $region23: #{tpu_custom_call.1} parent=19 // pred_region
          %p229 = scmp.lt.s32.totalorder %s22, 1
          %s230 = scalar_select %p229, %s22, 1
          %s231 = smul.addr %s230, 8
          %s232 = scalar_lea.vmem %s0, %s231
        $region24: #{tpu_custom_call.1} parent=19 // pred_fallthru
          _
        // Predicated region
        $region25: #{tpu_custom_call.1} parent=19 // pred_check
          %p233 = pneg %p73
        $region26: #{tpu_custom_call.1} parent=19 // pred_check_branch
          %235 = sbr.rel (%p233) target = $region28
        $region27: #{tpu_custom_call.1} parent=19 // pred_region
          %p236 = scmp.lt.s32.totalorder %s23, 3
          %s237 = scalar_select %p236, %s23, 3
          %s238 = smul.addr %s237, 4
          %s239 = smul.addr %s238, 4
          %s240 = scalar_lea.vmem %s1, %s239
        $region28: #{tpu_custom_call.1} parent=19 // pred_fallthru
          _
        // Predicated region
        $region29: #{tpu_custom_call.1} parent=19 // pred_check
          %p241 = pneg %p99
        $region30: #{tpu_custom_call.1} parent=19 // pred_check_branch
          %243 = sbr.rel (%p241) target = $region32
        $region31: #{tpu_custom_call.1} parent=19 // pred_region
          %p244 = scmp.lt.s32.totalorder %s23, 3
          %s245 = scalar_select %p244, %s23, 3
          %s246 = smul.addr %s245, 4
          %s247 = smul.addr %s246, 4
          %s248 = scalar_lea.vmem %s2, %s247
        $region32: #{tpu_custom_call.1} parent=19 // pred_fallthru
          _
        // Predicated region
        $region33: #{tpu_custom_call.1} parent=19 // pred_check
          %p249 = pneg %p125
        $region34: #{tpu_custom_call.1} parent=19 // pred_check_branch
          %251 = sbr.rel (%p249) target = $region36
        $region35: #{tpu_custom_call.1} parent=19 // pred_region
          %p252 = scmp.lt.s32.totalorder %s23, 3
          %s253 = scalar_select %p252, %s23, 3
          %s254 = smul.addr %s253, 4
          %s255 = smul.addr %s254, 4
          %s256 = scalar_lea.vmem %s3, %s255
        $region36: #{tpu_custom_call.1} parent=19 // pred_fallthru
          _
        // Predicated region
        $region37: #{tpu_custom_call.1} parent=19 // pred_check
          %p257 = pneg %p151
        $region38: #{tpu_custom_call.1} parent=19 // pred_check_branch
          %259 = sbr.rel (%p257) target = $region40
        $region39: #{tpu_custom_call.1} parent=19 // pred_region
          %p260 = scmp.lt.s32.totalorder %s23, 3
          %s261 = scalar_select %p260, %s23, 3
          %s262 = smul.addr %s261, 2
          %s263 = smul.addr %s262, 4
          %s264 = scalar_lea.vmem %s4, %s263
        $region40: #{tpu_custom_call.1} parent=19 // pred_fallthru
          _
      $region20: #{tpu_custom_call.1} parent=5 // pred_fallthru
        _
      %p265 = scmp.le.s32.totalorder 1, %s15
      %p266 = scmp.lt.s32.totalorder %s15, 9
      %p267 = pnand %p265, %p266
      %p268 = pneg %p267
      // Predicated region
      $region41: #{tpu_custom_call.1} parent=5 // pred_check
        _
      $region42: #{tpu_custom_call.1} parent=5 // pred_check_branch
        %270 = sbr.rel (%p267) target = $region44
      $region43: #{tpu_custom_call.1} parent=5 // pred_region
        %s271 = ssub.s32 %s15, 1
        %p272 = scmp.lt.s32.totalorder %s24, 1
        %s273 = scalar_select %p272, %s24, 1
        %s274 = smul.addr %s273, 8
        %s275 = scalar_lea.vmem %s0, %s274
        %p276 = pneg %p53
        %p277 = pneg %p50
        %p278 = scmp.lt.s32.totalorder %s25, 3
        %s279 = scalar_select %p278, %s25, 3
        %s280 = smul.addr %s279, 4
        %s281 = smul.addr %s280, 4
        %s282 = scalar_lea.vmem %s1, %s281
        %p283 = pneg %p79
        %p284 = pneg %p76
        %p285 = scmp.lt.s32.totalorder %s25, 3
        %s286 = scalar_select %p285, %s25, 3
        %s287 = smul.addr %s286, 4
        %s288 = smul.addr %s287, 4
        %s289 = scalar_lea.vmem %s2, %s288
        %p290 = pneg %p105
        %p291 = pneg %p102
        %p292 = scmp.lt.s32.totalorder %s25, 3
        %s293 = scalar_select %p292, %s25, 3
        %s294 = smul.addr %s293, 4
        %s295 = smul.addr %s294, 4
        %s296 = scalar_lea.vmem %s3, %s295
        %p297 = pneg %p131
        %p298 = pneg %p128
        %p299 = scmp.lt.s32.totalorder %s25, 3
        %s300 = scalar_select %p299, %s25, 3
        %s301 = smul.addr %s300, 2
        %s302 = smul.addr %s301, 4
        %s303 = scalar_lea.vmem %s4, %s302
        %p304 = pneg %p157
        %p305 = pneg %p154
        %p306 = pneg %p178
        %p307 = pneg %p175
        %p308 = pneg %p204
        %p309 = pneg %p201
        %s310 = sand.u32 %s191, 1
        %s311 = scalar_lea.sflag [#allocation4], %s310
        %s312 = sand.u32 %s191, 1
        %s313 = smul.addr %s312, 8
        %s314 = scalar_lea.vmem [#allocation3], %s313
        %p315 = scmp.lt.s32.totalorder %s24, 1
        %s316 = scalar_select %p315, %s24, 1
        %s317 = smul.addr %s316, 8
        %s318 = scalar_lea.vmem %s0, %s317
        %p319 = scmp.lt.s32.totalorder %s25, 3
        %s320 = scalar_select %p319, %s25, 3
        %s321 = smul.addr %s320, 4
        %s322 = smul.addr %s321, 4
        %s323 = scalar_lea.vmem %s1, %s322
        %p324 = scmp.lt.s32.totalorder %s25, 3
        %s325 = scalar_select %p324, %s25, 3
        %s326 = smul.addr %s325, 4
        %s327 = smul.addr %s326, 4
        %s328 = scalar_lea.vmem %s2, %s327
        %p329 = scmp.lt.s32.totalorder %s25, 3
        %s330 = scalar_select %p329, %s25, 3
        %s331 = smul.addr %s330, 4
        %s332 = smul.addr %s331, 4
        %s333 = scalar_lea.vmem %s3, %s332
        %p334 = scmp.lt.s32.totalorder %s25, 3
        %s335 = scalar_select %p334, %s25, 3
        %s336 = smul.addr %s335, 2
        %s337 = smul.addr %s336, 4
        %s338 = scalar_lea.vmem %s4, %s337
        %p340 = scmp.eq.s32.totalorder %s25, 0
        // Predicated region
        $region45: #{tpu_custom_call.1} parent=43 // pred_check
          %p341 = pneg %p340
        $region46: #{tpu_custom_call.1} parent=43 // pred_check_branch
          %343 = sbr.rel (%p341) target = $region48
        $region47: #{tpu_custom_call.1} parent=43 // pred_region
          %344 = vst [vmem:[#allocation2] sm:$0xff] 0.0
        $region48: #{tpu_custom_call.1} parent=43 // pred_fallthru
          _
        %v345 = vld [vmem:[%s318] sm:$0xff]
        %v346 = vpack.c.bf16 %v345, %v345
        %v347 = vld [vmem:[%s323] sm:$0xf]
        %v348 = vld [vmem:[%s323 + $0x4] sm:$0xf]
        %v349 = vld [vmem:[%s323 + $0x8] sm:$0xf]
        %v350 = vld [vmem:[%s323 + $0xc] sm:$0xf]
        %v351 = vld [vmem:[%s328] sm:$0xf]
        %v352 = vld [vmem:[%s328 + $0x4] sm:$0xf]
        %v353 = vld [vmem:[%s328 + $0x8] sm:$0xf]
        %v354 = vld [vmem:[%s328 + $0xc] sm:$0xf]
        %v355 = vld [vmem:[%s333] sm:$0xf]
        %v356 = vld [vmem:[%s333 + $0x4] sm:$0xf]
        %v357 = vld [vmem:[%s333 + $0x8] sm:$0xf]
        %v358 = vld [vmem:[%s333 + $0xc] sm:$0xf]
        %v359 = vld [vmem:[%s338] sm:$0xf]
        %v360 = vld [vmem:[%s338 + $0x4] sm:$0xf]
        %v365 = vunpack.c.l.b16 %v347
        %v366 = vunpack.c.l.b16 %v348
        %v367 = vunpack.c.l.b16 %v349
        %v368 = vunpack.c.l.b16 %v350
        %v369 = vpack.c.b16 %v366, %v365
        %v370 = vpack.c.b16 %v368, %v367
        %vm373 = vcmask 261120
        %v375 = vsel %vm373, %v346, 0
        %377 = vmatprep.subr.bf16.mxu0 0
        %378 = vmatpush1.bf16.msra.mxu0 %v369
        %379 = vmatprep.subr.bf16.mxu0 0
        %380 = vmatpush1.bf16.msra.mxu0 %v370
        %381 = vmatprep.subr.bf16.mxu0 0
        %382 = vmatpush1.bf16.msra.mxu0 0
        %383 = vmatprep.subr.bf16.mxu0 0
        %384 = vmatpush1.bf16.msra.mxu0 0
        %385 = vmatprep.subr.bf16.mxu0 0
        %386 = vmatpush1.bf16.msra.mxu0 0
        %387 = vmatprep.subr.bf16.mxu0 0
        %388 = vmatpush1.bf16.msra.mxu0 0
        %389 = vmatprep.subr.bf16.mxu0 0
        %390 = vmatpush1.bf16.msra.mxu0 0
        %391 = vmatprep.subr.bf16.mxu0 0
        %392 = vmatpush1.bf16.msra.mxu0 0
        %393 = vmatprep.subr.bf16.mxu0 0
        %394 = vmatpush1.bf16.msra.mxu0 0
        %395 = vmatprep.subr.bf16.mxu0 0
        %396 = vmatpush1.bf16.msra.mxu0 0
        %397 = vmatprep.subr.bf16.mxu0 0
        %398 = vmatpush1.bf16.msra.mxu0 0
        %399 = vmatprep.subr.bf16.mxu0 0
        %400 = vmatpush1.bf16.msra.mxu0 0
        %401 = vmatprep.subr.bf16.mxu0 0
        %402 = vmatpush1.bf16.msra.mxu0 0
        %403 = vmatprep.subr.bf16.mxu0 0
        %404 = vmatpush1.bf16.msra.mxu0 0
        %405 = vmatprep.subr.bf16.mxu0 0
        %406 = vmatpush1.bf16.msra.mxu0 0
        %407 = vmatprep.subr.bf16.mxu0 0
        %408 = vmatpush1.bf16.msra.mxu0 0
        %409 = vmatprep.mubr.bf16.mxu0 0
        %410 = vmatmul.mubr.bf16.gmra.mrb[0].mxu0 %v375
        %v411 = vpop.f32.mrb[0].mxu0
        %v412 = vadd.f32 0.0, %v411
        %v413 = vpop.f32.mrb[0].mxu0
        %v414 = vpop.f32.mrb[0].mxu0
        %v415 = vpop.f32.mrb[0].mxu0
        %416 = vdwg.mxu0
        %v421 = vunpack.c.l.b16 %v351
        %v422 = vunpack.c.l.b16 %v352
        %v423 = vunpack.c.l.b16 %v353
        %v424 = vunpack.c.l.b16 %v354
        %v425 = vpack.c.b16 %v422, %v421
        %v426 = vpack.c.b16 %v424, %v423
        %429 = vmatprep.subr.bf16.mxu0 0
        %430 = vmatpush1.bf16.msra.mxu0 %v425
        %431 = vmatprep.subr.bf16.mxu0 0
        %432 = vmatpush1.bf16.msra.mxu0 %v426
        %433 = vmatprep.subr.bf16.mxu0 0
        %434 = vmatpush1.bf16.msra.mxu0 0
        %435 = vmatprep.subr.bf16.mxu0 0
        %436 = vmatpush1.bf16.msra.mxu0 0
        %437 = vmatprep.subr.bf16.mxu0 0
        %438 = vmatpush1.bf16.msra.mxu0 0
        %439 = vmatprep.subr.bf16.mxu0 0
        %440 = vmatpush1.bf16.msra.mxu0 0
        %441 = vmatprep.subr.bf16.mxu0 0
        %442 = vmatpush1.bf16.msra.mxu0 0
        %443 = vmatprep.subr.bf16.mxu0 0
        %444 = vmatpush1.bf16.msra.mxu0 0
        %445 = vmatprep.subr.bf16.mxu0 0
        %446 = vmatpush1.bf16.msra.mxu0 0
        %447 = vmatprep.subr.bf16.mxu0 0
        %448 = vmatpush1.bf16.msra.mxu0 0
        %449 = vmatprep.subr.bf16.mxu0 0
        %450 = vmatpush1.bf16.msra.mxu0 0
        %451 = vmatprep.subr.bf16.mxu0 0
        %452 = vmatpush1.bf16.msra.mxu0 0
        %453 = vmatprep.subr.bf16.mxu0 0
        %454 = vmatpush1.bf16.msra.mxu0 0
        %455 = vmatprep.subr.bf16.mxu0 0
        %456 = vmatpush1.bf16.msra.mxu0 0
        %457 = vmatprep.subr.bf16.mxu0 0
        %458 = vmatpush1.bf16.msra.mxu0 0
        %459 = vmatprep.subr.bf16.mxu0 0
        %460 = vmatpush1.bf16.msra.mxu0 0
        %461 = vmatprep.mubr.bf16.mxu0 0
        %462 = vmatmul.mubr.bf16.gmra.mrb[0].mxu0 %v375
        %v463 = vpop.f32.mrb[0].mxu0
        %v464 = vadd.f32 0.0, %v463
        %v465 = vpop.f32.mrb[0].mxu0
        %v466 = vpop.f32.mrb[0].mxu0
        %v467 = vpop.f32.mrb[0].mxu0
        %468 = vdwg.mxu0
        %v473 = vunpack.c.l.b16 %v355
        %v474 = vunpack.c.l.b16 %v356
        %v475 = vunpack.c.l.b16 %v357
        %v476 = vunpack.c.l.b16 %v358
        %v477 = vpack.c.b16 %v474, %v473
        %v478 = vpack.c.b16 %v476, %v475
        %481 = vmatprep.subr.bf16.mxu0 0
        %482 = vmatpush1.bf16.msra.mxu0 %v477
        %483 = vmatprep.subr.bf16.mxu0 0
        %484 = vmatpush1.bf16.msra.mxu0 %v478
        %485 = vmatprep.subr.bf16.mxu0 0
        %486 = vmatpush1.bf16.msra.mxu0 0
        %487 = vmatprep.subr.bf16.mxu0 0
        %488 = vmatpush1.bf16.msra.mxu0 0
        %489 = vmatprep.subr.bf16.mxu0 0
        %490 = vmatpush1.bf16.msra.mxu0 0
        %491 = vmatprep.subr.bf16.mxu0 0
        %492 = vmatpush1.bf16.msra.mxu0 0
        %493 = vmatprep.subr.bf16.mxu0 0
        %494 = vmatpush1.bf16.msra.mxu0 0
        %495 = vmatprep.subr.bf16.mxu0 0
        %496 = vmatpush1.bf16.msra.mxu0 0
        %497 = vmatprep.subr.bf16.mxu0 0
        %498 = vmatpush1.bf16.msra.mxu0 0
        %499 = vmatprep.subr.bf16.mxu0 0
        %500 = vmatpush1.bf16.msra.mxu0 0
        %501 = vmatprep.subr.bf16.mxu0 0
        %502 = vmatpush1.bf16.msra.mxu0 0
        %503 = vmatprep.subr.bf16.mxu0 0
        %504 = vmatpush1.bf16.msra.mxu0 0
        %505 = vmatprep.subr.bf16.mxu0 0
        %506 = vmatpush1.bf16.msra.mxu0 0
        %507 = vmatprep.subr.bf16.mxu0 0
        %508 = vmatpush1.bf16.msra.mxu0 0
        %509 = vmatprep.subr.bf16.mxu0 0
        %510 = vmatpush1.bf16.msra.mxu0 0
        %511 = vmatprep.subr.bf16.mxu0 0
        %512 = vmatpush1.bf16.msra.mxu0 0
        %513 = vmatprep.mubr.bf16.mxu0 0
        %514 = vmatmul.mubr.bf16.gmra.mrb[0].mxu0 %v375
        %v515 = vpop.f32.mrb[0].mxu0
        %v516 = vadd.f32 0.0, %v515
        %v517 = vpop.f32.mrb[0].mxu0
        %v518 = vpop.f32.mrb[0].mxu0
        %v519 = vpop.f32.mrb[0].mxu0
        %520 = vdwg.mxu0
        %v521 = vpack.c.bf16 %v412, %v412
        %v522 = vpack.c.bf16 %v464, %v464
        %vm523 = vcmask 130048
        %v525 = vsel %vm523, %v521, 0
        %v528 = vsel %vm523, %v522, 0
        %530 = vmatprep.subr.bf16.mxu0 0
        %531 = vmatpush1.bf16.xpose.msra.mxu0 %v528
        %532 = vmatprep.subr.bf16.mxu0 0
        %533 = vmatpush1.bf16.xpose.msra.mxu0 0
        %534 = vmatprep.subr.bf16.mxu0 0
        %535 = vmatpush1.bf16.xpose.msra.mxu0 0
        %536 = vmatprep.subr.bf16.mxu0 0
        %537 = vmatpush1.bf16.xpose.msra.mxu0 0
        %538 = vmatprep.subr.bf16.mxu0 0
        %539 = vmatpush1.bf16.xpose.msra.mxu0 0
        %540 = vmatprep.subr.bf16.mxu0 0
        %541 = vmatpush1.bf16.xpose.msra.mxu0 0
        %542 = vmatprep.subr.bf16.mxu0 0
        %543 = vmatpush1.bf16.xpose.msra.mxu0 0
        %544 = vmatprep.subr.bf16.mxu0 0
        %545 = vmatpush1.bf16.xpose.msra.mxu0 0
        %546 = vmatprep.subr.bf16.mxu0 0
        %547 = vmatpush1.bf16.xpose.msra.mxu0 0
        %548 = vmatprep.subr.bf16.mxu0 0
        %549 = vmatpush1.bf16.xpose.msra.mxu0 0
        %550 = vmatprep.subr.bf16.mxu0 0
        %551 = vmatpush1.bf16.xpose.msra.mxu0 0
        %552 = vmatprep.subr.bf16.mxu0 0
        %553 = vmatpush1.bf16.xpose.msra.mxu0 0
        %554 = vmatprep.subr.bf16.mxu0 0
        %555 = vmatpush1.bf16.xpose.msra.mxu0 0
        %556 = vmatprep.subr.bf16.mxu0 0
        %557 = vmatpush1.bf16.xpose.msra.mxu0 0
        %558 = vmatprep.subr.bf16.mxu0 0
        %559 = vmatpush1.bf16.xpose.msra.mxu0 0
        %560 = vmatprep.subr.bf16.mxu0 0
        %561 = vmatpush1.bf16.xpose.msra.mxu0 0
        %562 = vmatprep.mubr.bf16.mxu0 0
        %563 = vmatmul.mubr.bf16.gmra.mrb[0].mxu0 %v525
        %v564 = vpop.f32.mrb[0].mxu0
        %v565 = vadd.f32 0.0, %v564
        %v566 = vpop.f32.mrb[0].mxu0
        %v567 = vpop.f32.mrb[0].mxu0
        %v568 = vpop.f32.mrb[0].mxu0
        %569 = vdwg.mxu0
        %vm570 = vcmask 64512
        %v571 = vsel %vm570, %v565, -inf
        %572 = vmax.xlane.f32.xlu0 %v571
        %v573 = vpop.xlane.xlu0 %572
        %v574 = vsub.f32 %v565, %v573
        %v575 = vmul.f32 %v574, 1.442695
        %v576 = vpow.pop %v575
        %v577 = vsel %vm570, %v576, 0.0
        %578 = vadd.xlane.f32.xlu0 %v577
        %v579 = vpop.xlane.xlu0 %578
        %v580 = vrcp.pop %v579
        %v581 = vmul.f32 %v576, %v580
        %v582 = vpack.c.bf16 %v581, %v581
        %v583 = vpack.c.bf16 %v516, %v516
        %v585 = vsel %vm570, %v582, 0
        %vm587 = vcmask 1043456
        %v589 = vsel %vm587, %v583, 0
        %591 = vmatprep.subr.bf16.mxu0 0
        %592 = vmatpush1.bf16.msra.mxu0 %v589
        %593 = vmatprep.subr.bf16.mxu0 0
        %594 = vmatpush1.bf16.msra.mxu0 0
        %595 = vmatprep.subr.bf16.mxu0 0
        %596 = vmatpush1.bf16.msra.mxu0 0
        %597 = vmatprep.subr.bf16.mxu0 0
        %598 = vmatpush1.bf16.msra.mxu0 0
        %599 = vmatprep.subr.bf16.mxu0 0
        %600 = vmatpush1.bf16.msra.mxu0 0
        %601 = vmatprep.subr.bf16.mxu0 0
        %602 = vmatpush1.bf16.msra.mxu0 0
        %603 = vmatprep.subr.bf16.mxu0 0
        %604 = vmatpush1.bf16.msra.mxu0 0
        %605 = vmatprep.subr.bf16.mxu0 0
        %606 = vmatpush1.bf16.msra.mxu0 0
        %607 = vmatprep.subr.bf16.mxu0 0
        %608 = vmatpush1.bf16.msra.mxu0 0
        %609 = vmatprep.subr.bf16.mxu0 0
        %610 = vmatpush1.bf16.msra.mxu0 0
        %611 = vmatprep.subr.bf16.mxu0 0
        %612 = vmatpush1.bf16.msra.mxu0 0
        %613 = vmatprep.subr.bf16.mxu0 0
        %614 = vmatpush1.bf16.msra.mxu0 0
        %615 = vmatprep.subr.bf16.mxu0 0
        %616 = vmatpush1.bf16.msra.mxu0 0
        %617 = vmatprep.subr.bf16.mxu0 0
        %618 = vmatpush1.bf16.msra.mxu0 0
        %619 = vmatprep.subr.bf16.mxu0 0
        %620 = vmatpush1.bf16.msra.mxu0 0
        %621 = vmatprep.subr.bf16.mxu0 0
        %622 = vmatpush1.bf16.msra.mxu0 0
        %623 = vmatprep.mubr.bf16.mxu0 0
        %624 = vmatmul.mubr.bf16.gmra.mrb[0].mxu0 %v585
        %v625 = vpop.f32.mrb[0].mxu0
        %v626 = vadd.f32 0.0, %v625
        %v627 = vpop.f32.mrb[0].mxu0
        %v628 = vpop.f32.mrb[0].mxu0
        %v629 = vpop.f32.mrb[0].mxu0
        %630 = vdwg.mxu0
        %v631 = vld [vmem:[#allocation2] sm:$0xff]
        %v632 = vpack.c.bf16 %v626, %v626
        %v635 = vunpack.c.l.b16 %v359
        %v636 = vunpack.c.l.b16 %v360
        %v637 = vpack.c.b16 %v636, %v635
        %v640 = vsel %vm523, %v632, 0
        %642 = vmatprep.subr.bf16.mxu0 0
        %643 = vmatpush1.bf16.msra.mxu0 %v637
        %644 = vmatprep.subr.bf16.mxu0 0
        %645 = vmatpush1.bf16.msra.mxu0 0
        %646 = vmatprep.subr.bf16.mxu0 0
        %647 = vmatpush1.bf16.msra.mxu0 0
        %648 = vmatprep.subr.bf16.mxu0 0
        %649 = vmatpush1.bf16.msra.mxu0 0
        %650 = vmatprep.subr.bf16.mxu0 0
        %651 = vmatpush1.bf16.msra.mxu0 0
        %652 = vmatprep.subr.bf16.mxu0 0
        %653 = vmatpush1.bf16.msra.mxu0 0
        %654 = vmatprep.subr.bf16.mxu0 0
        %655 = vmatpush1.bf16.msra.mxu0 0
        %656 = vmatprep.subr.bf16.mxu0 0
        %657 = vmatpush1.bf16.msra.mxu0 0
        %658 = vmatprep.subr.bf16.mxu0 0
        %659 = vmatpush1.bf16.msra.mxu0 0
        %660 = vmatprep.subr.bf16.mxu0 0
        %661 = vmatpush1.bf16.msra.mxu0 0
        %662 = vmatprep.subr.bf16.mxu0 0
        %663 = vmatpush1.bf16.msra.mxu0 0
        %664 = vmatprep.subr.bf16.mxu0 0
        %665 = vmatpush1.bf16.msra.mxu0 0
        %666 = vmatprep.subr.bf16.mxu0 0
        %667 = vmatpush1.bf16.msra.mxu0 0
        %668 = vmatprep.subr.bf16.mxu0 0
        %669 = vmatpush1.bf16.msra.mxu0 0
        %670 = vmatprep.subr.bf16.mxu0 0
        %671 = vmatpush1.bf16.msra.mxu0 0
        %672 = vmatprep.subr.bf16.mxu0 0
        %673 = vmatpush1.bf16.msra.mxu0 0
        %674 = vmatprep.mubr.bf16.mxu0 0
        %675 = vmatmul.mubr.bf16.gmra.mrb[0].mxu0 %v640
        %v676 = vpop.f32.mrb[0].mxu0
        %v677 = vadd.f32 0.0, %v676
        %v678 = vpop.f32.mrb[0].mxu0
        %v679 = vpop.f32.mrb[0].mxu0
        %v680 = vpop.f32.mrb[0].mxu0
        %681 = vdwg.mxu0
        %v682 = vadd.f32 %v631, %v677
        %683 = vst [vmem:[#allocation2] sm:$0xff] %v682
        %p684 = scmp.eq.s32.totalorder %s25, 3
        // Predicated region
        $region49: #{tpu_custom_call.1} parent=43 // pred_check
          %p685 = pneg %p684
        $region50: #{tpu_custom_call.1} parent=43 // pred_check_branch
          %687 = sbr.rel (%p685) target = $region52
        $region51: #{tpu_custom_call.1} parent=43 // pred_region
          %v688 = vld [vmem:[#allocation2] sm:$0xff]
          %v689 = vld [vmem:[%s5] sm:$0x1]
          %v691 = vlaneseq
          %v692 = vshrl.u32 %v691, 7
          %v693 = vsub.s32 0, %v692
          %v694 = vrot.slane %v689, %v693
          %v696 = vadd.f32 %v688, %v694
          %697 = vst [vmem:[%s314] sm:$0xff] %v696
        $region52: #{tpu_custom_call.1} parent=43 // pred_fallthru
          _
        %s698 = sand.u32 %s191, 1
        %s699 = scalar_lea.sflag [#allocation4], %s698
        %s700 = sand.u32 %s191, 1
        %s701 = smul.addr %s700, 8
        %s702 = scalar_lea.vmem [#allocation3], %s701
        // Predicated region
        $region53: #{tpu_custom_call.1} parent=43 // pred_check
          %p703 = pneg %p201
        $region54: #{tpu_custom_call.1} parent=43 // pred_check_branch
          %705 = sbr.rel (%p703) target = $region56
        $region55: #{tpu_custom_call.1} parent=43 // pred_region
          %s707 = ssub.s32 128, 128
          %708 = vsyncadd %s699, %s707
          %s709 = smul.addr %s24, 128
          %s710 = scalar_lea.hbm %s6, %s709
          %s712 = sshll.u32 %s702, 4
          %s713 = int_to_ptr.vmem [resolvable:$true] %s712
          %715 = dma.vmem_to_hbm [thread:$0]  %s713, 128, %s710, %s699
        $region56: #{tpu_custom_call.1} parent=43 // pred_fallthru
          _
      $region44: #{tpu_custom_call.1} parent=5 // pred_fallthru
        _
      %p716 = scmp.le.s32.totalorder 2, %s15
      // Predicated region
      $region57: #{tpu_custom_call.1} parent=5 // pred_check
        %p717 = pneg %p716
      $region58: #{tpu_custom_call.1} parent=5 // pred_check_branch
        %719 = sbr.rel (%p717) target = $region60
      $region59: #{tpu_custom_call.1} parent=5 // pred_region
        %s720 = ssub.s32 %s15, 2
        // Predicated region
        $region61: #{tpu_custom_call.1} parent=59 // pred_check
          %p721 = pneg %p207
        $region62: #{tpu_custom_call.1} parent=59 // pred_check_branch
          %723 = sbr.rel (%p721) target = $region64
        $region63: #{tpu_custom_call.1} parent=59 // pred_region
          %s724 = sand.u32 %s192, 1
          %s725 = scalar_lea.sflag [#allocation4], %s724
          %s726 = sand.u32 %s192, 1
          %s727 = smul.addr %s726, 8
          %s728 = scalar_lea.vmem [#allocation3], %s727
          %729 = dma.done %s725, 128
        $region64: #{tpu_custom_call.1} parent=59 // pred_fallthru
          _
      $region60: #{tpu_custom_call.1} parent=5 // pred_fallthru
        _
    $region6: #{tpu_custom_call.1} parent=1 // loop_footer
      %s19 = sadd.s32 1, %s15
    $region7: #{tpu_custom_call.1} parent=1 // loop_footer_branch
      %14 = sbr.rel target = $region3
    $region8: #{tpu_custom_call.1} parent=1 // loop_exit
      _
    %730 = vsyncpa [#allocation4], 1
    %s731 = scalar_lea.sflag [#allocation4], 1
    %732 = vsyncpa %s731, 1

</llo_original>
